<compile_context>
chip_gen: v7x
topology: tpu7x:2x2x1
jax: 0.10.0
libtpu: 0.0.40
codegen_flags: <defaults>
</compile_context>

<pallas_src>
import functools
import math

import jax
import jax.numpy as jnp
from jax.experimental import pallas as pl
from jax.experimental.pallas import tpu as pltpu

_LANE = 128


def _round_up(x: int, m: int) -> int:
    return ((x + m - 1) // m) * m


def _pad_feature_dim(d: int, prefer_256: bool) -> int:
    p = _round_up(d, _LANE)
    # v6e/v7x MXU is 2x256^2: if rounding to 256 costs <=20% extra elements,
    # take the full-width pass.  Otherwise keep 128 (always correct, v5e-friendly).
    if prefer_256 and p % 256 != 0 and _round_up(d, 256) <= int(1.2 * d):
        return _round_up(d, 256)
    return p


def _chip_vmem_bytes() -> int:
    try:
        return int(pltpu.get_tpu_info().vmem_capacity_bytes)
    except Exception:
        return 64 << 20  # conservative (v7x per-TC size); safe on v5e/v6e (128 MiB)


def prepare_poly_linear_params(params, d_in, *, compute_dtype=jnp.bfloat16, prefer_256=True):
    """One-time padding + dtype cast of the weights (do NOT redo this every forward).

    params: list of (w, b) with w of shape (d_in, d_out) -- transposed vs nn.Linear --
            and b of shape (d_out,) or (1, d_out).
    """
    dims = [d_in] + [w.shape[1] for w, _ in params]
    pdims = [_pad_feature_dim(d, prefer_256) for d in dims]
    padded = []
    weight_bytes = 0
    for (w, b), pi, po in zip(params, pdims[:-1], pdims[1:]):
        # Zero padding keeps the math exact; bf16 operands feed the MXU at full rate.
        wp = (jnp.zeros((pi, po), compute_dtype)
              .at[: w.shape[0], : w.shape[1]].set(w.astype(compute_dtype)))
        bp = (jnp.zeros((1, po), jnp.float32)
              .at[:, : w.shape[1]].set(jnp.asarray(b, jnp.float32).reshape(1, -1)))
        padded.append((wp, bp))
        weight_bytes += wp.size * wp.dtype.itemsize + bp.size * bp.dtype.itemsize
    return dict(padded=padded, dims=dims, pdims=pdims,
                weight_bytes=int(weight_bytes), compute_dtype=compute_dtype)


def _poly_linear_kernel(*refs, n_layers: int, compute_dtype):
    """Fused MLP over one batch tile: h = relu(h @ W_i + b_i), no ReLU on last layer."""
    x_ref = refs[0]
    o_ref = refs[-1]
    wb = refs[1:-1]  # (w0, b0, w1, b1, ...) -- all VMEM-resident

    h = x_ref[...]
    for i in range(n_layers):
        w = wb[2 * i][...]        # bf16 padded weight (in, out)
        b = wb[2 * i + 1][...]    # f32 (1, out) -> broadcasts over rows
        # bf16 MXU operands, f32 accumulation; bias-add / ReLU stay f32.
        h = jnp.dot(h.astype(compute_dtype), w, preferred_element_type=jnp.float32) + b
        if i < n_layers - 1:
            h = jnp.maximum(h, 0.0)
    o_ref[...] = h.astype(o_ref.dtype)


def poly_linear_forward(x, prepared, *, vmem_budget_bytes=None):
    """Matches PolyLinear.forward with activation_fn=ReLU between layers, none after
    the last.  output_fn / input_dropout / l1_weight_decay are None (defaults) and
    therefore omitted."""
    # TODO(synk): input_dropout / output_fn / l1_weight_decay are None in this
    # configuration and are not implemented.
    padded = prepared["padded"]
    dims, pdims = prepared["dims"], prepared["pdims"]
    compute_dtype = prepared["compute_dtype"]
    n_layers = len(padded)

    lead_shape = x.shape[:-1]
    d_in = x.shape[-1]
    assert d_in == dims[0], "input feature dim does not match prepared params"
    x2 = x.reshape(-1, d_in)
    batch = x2.shape[0]
    dtype = x.dtype
    itemsize = jnp.dtype(dtype).itemsize
    cbytes = jnp.dtype(compute_dtype).itemsize

    # Sublane granularity of the batch tile follows the I/O dtype packing.
    sub = {4: 8, 2: 16, 1: 32}.get(itemsize, 8)

    # --- chip-aware VMEM budget ---------------------------------------------
    vmem_cap = _chip_vmem_bytes() - (8 << 20)  # headroom for Mosaic internal scratch
    budget = vmem_cap if vmem_budget_bytes is None else min(vmem_budget_bytes, vmem_cap)

    # Per-row live intermediate bytes for the widest adjacent layer pair:
    # f32 h_in + its bf16 cast + f32 h_out are live during that dot.
    pair_row_bytes = max(pi * (4 + cbytes) + po * 4
                         for pi, po in zip(pdims[:-1], pdims[1:]))

    def est_vmem(tile):
        act = tile * (2 * pdims[0] * itemsize      # double-buffered x tile
                      + 2 * pdims[-1] * itemsize   # double-buffered out tile
                      + pair_row_bytes)            # in-flight intermediates
        return act + prepared["weight_bytes"]      # weights single-buffered (Buffered(1))

    # Keep >= 2 grid steps whenever batch allows, so ("parallel",) can shard the
    # grid across v7x's 2 TensorCores (negligible cost on single-TC v5e/v6e).
    tile_cap = _round_up(batch, sub)
    if batch >= 2 * sub:
        tile_cap = min(tile_cap, _round_up(pl.cdiv(batch, 2), sub))

    tile = sub
    for cand in (2048, 1024, 512, 256, 128, 64, 32, 16, 8):
        if cand < sub or cand > tile_cap:
            continue
        if est_vmem(cand) <= budget:
            tile = cand
            break
    # TODO(synk): if the resident padded weights alone exceed the VMEM budget
    # (possible on v7x's 64 MiB for very wide MLPs), stream the largest layer over
    # an N/K grid axis or with pltpu.emit_pipeline instead of keeping it resident.

    padded_batch = _round_up(batch, tile)
    if padded_batch == batch and pdims[0] == d_in:
        x_p = x2  # already aligned -> no extra HBM copy
    else:
        x_p = jnp.zeros((padded_batch, pdims[0]), dtype).at[:batch, :d_in].set(x2)

    flat_wb = []
    for wp, bp in padded:
        flat_wb += [wp, bp]

    # Tight limit (small slack covers the double-buffered-weights fallback path),
    # clamped to the chip's physical VMEM.
    vmem_limit = max(min(est_vmem(tile) + prepared["weight_bytes"] + (4 << 20), vmem_cap),
                     16 << 20)

    def run(single_buffer_weights: bool):
        in_specs = [pl.BlockSpec((tile, pdims[0]), lambda i: (i, 0))]
        wkw = {"pipeline_mode": pl.Buffered(1)} if single_buffer_weights else {}
        for wp, bp in padded:
            # Constant index_map -> VMEM-resident; Buffered(1) avoids a useless 2x copy.
            in_specs.append(pl.BlockSpec(wp.shape, lambda i: (0, 0), **wkw))
            in_specs.append(pl.BlockSpec(bp.shape, lambda i: (0, 0), **wkw))
        out_spec = pl.BlockSpec((tile, pdims[-1]), lambda i: (i, 0))
        call = pl.pallas_call(
            functools.partial(_poly_linear_kernel, n_layers=n_layers,
                              compute_dtype=compute_dtype),
            out_shape=jax.ShapeDtypeStruct((padded_batch, pdims[-1]), dtype),
            grid=(padded_batch // tile,),
            in_specs=in_specs,
            out_specs=out_spec,
            compiler_params=pltpu.CompilerParams(
                dimension_semantics=("parallel",),   # batch shards across v7x's 2 TCs
                vmem_limit_bytes=int(vmem_limit),
            ),
        )
        return call(x_p, *flat_wb)

    try:
        out_padded = jax.block_until_ready(run(True))
    except Exception:
        # pipeline_mode=pl.Buffered(1) unsupported on this jax version -> default buffering.
        out_padded = run(False)

    out = out_padded[:batch, : dims[-1]]
    return out.reshape(*lead_shape, dims[-1])


def init_poly_linear_params(key, layer_config):
    """Deterministic nn.Linear-style init: U(-1/sqrt(fan_in), 1/sqrt(fan_in))."""
    params = []
    for d_in, d_out in zip(layer_config[:-1], layer_config[1:]):
        key, kw, kb = jax.random.split(key, 3)
        bound = 1.0 / math.sqrt(d_in)
        w = jax.random.uniform(kw, (d_in, d_out), jnp.float32, -bound, bound)
        b = jax.random.uniform(kb, (1, d_out), jnp.float32, -bound, bound)
        params.append((w, b))
    return params


def poly_linear_reference(x, params):
    n = len(params)
    out = x
    for i, (w, b) in enumerate(params):
        out = out @ w + b
        if i < n - 1:
            out = jnp.maximum(out, 0.0)
    return out


if __name__ == "__main__":
    layer_config = [32, 64, 16]   # -> Linear(32,64) + ReLU + Linear(64,16)
    batch = 8

    key = jax.random.PRNGKey(0)
    key, kx = jax.random.split(key)
    x = jax.random.normal(kx, (batch, layer_config[0]), jnp.float32)

    params = init_poly_linear_params(key, layer_config)
    prepared = prepare_poly_linear_params(params, layer_config[0])  # one-time pad + bf16 cast

    y = poly_linear_forward(x, prepared)
    y = jax.block_until_ready(y)

    y_ref = poly_linear_reference(x, params)
    assert y.shape == (batch, layer_config[-1])
    # bf16 MXU operands (f32 accumulation) -> relaxed tolerance vs the f32 reference.
    assert jnp.allclose(y, y_ref, atol=5e-2, rtol=5e-2), float(jnp.max(jnp.abs(y - y_ref)))

    print("KERNEL_OK")
</pallas_src>

<mosaic_0001>
module attributes {stable_mosaic.version = 11 : i64} {
  func.func @_poly_linear_kernel(%arg0: i32, %arg1: memref<8x128xf32, #tpu.memory_space<vmem>>, %arg2: memref<128x128xbf16, #tpu.memory_space<vmem>>, %arg3: memref<1x128xf32, #tpu.memory_space<vmem>>, %arg4: memref<128x128xbf16, #tpu.memory_space<vmem>>, %arg5: memref<1x128xf32, #tpu.memory_space<vmem>>, %arg6: memref<8x128xf32, #tpu.memory_space<vmem>>) attributes {dimension_semantics = [#tpu.dimension_semantics<parallel>], iteration_bounds = array<i64: 1>, scalar_prefetch = 0 : i64, scratch_operands = 0 : i64, tpu.core_type = #tpu.core_type<tc>, window_params = [{transform_indices = @transform_0, window_bounds = array<i64: 8, 128>}, {pipeline_mode = #tpu.pipeline_mode<synchronous>, transform_indices = @transform_1, window_bounds = array<i64: 128, 128>}, {pipeline_mode = #tpu.pipeline_mode<synchronous>, transform_indices = @transform_2, window_bounds = array<i64: 1, 128>}, {pipeline_mode = #tpu.pipeline_mode<synchronous>, transform_indices = @transform_3, window_bounds = array<i64: 128, 128>}, {pipeline_mode = #tpu.pipeline_mode<synchronous>, transform_indices = @transform_4, window_bounds = array<i64: 1, 128>}, {transform_indices = @transform_5, window_bounds = array<i64: 8, 128>}]} {
    %c0 = arith.constant 0 : index
    %c0_0 = arith.constant 0 : index
    %0 = vector.load %arg1[%c0, %c0_0] : memref<8x128xf32, #tpu.memory_space<vmem>>, vector<8x128xf32>
    %c0_1 = arith.constant 0 : index
    %c0_2 = arith.constant 0 : index
    %1 = vector.load %arg2[%c0_1, %c0_2] : memref<128x128xbf16, #tpu.memory_space<vmem>>, vector<128x128xbf16>
    %c0_3 = arith.constant 0 : index
    %c0_4 = arith.constant 0 : index
    %2 = vector.load %arg3[%c0_3, %c0_4] : memref<1x128xf32, #tpu.memory_space<vmem>>, vector<1x128xf32>
    %3 = arith.truncf %0 : vector<8x128xf32> to vector<8x128xbf16>
    %cst = arith.constant dense<0.000000e+00> : vector<8x128xf32>
    %4 = tpu.matmul %3, %1, %cst {dimension_numbers = #tpu.dot_dimension_numbers<[1], [0], [0], [1], [0, 0, 1, 1], [], []>} : vector<8x128xbf16>, vector<128x128xbf16>, vector<8x128xf32> -> vector<8x128xf32>
    %5 = vector.broadcast %2 : vector<1x128xf32> to vector<8x128xf32>
    %6 = arith.addf %4, %5 : vector<8x128xf32>
    %cst_5 = arith.constant 0.000000e+00 : f32
    %7 = vector.broadcast %cst_5 : f32 to vector<8x128xf32>
    %8 = arith.maximumf %6, %7 : vector<8x128xf32>
    %c0_6 = arith.constant 0 : index
    %c0_7 = arith.constant 0 : index
    %9 = vector.load %arg4[%c0_6, %c0_7] : memref<128x128xbf16, #tpu.memory_space<vmem>>, vector<128x128xbf16>
    %c0_8 = arith.constant 0 : index
    %c0_9 = arith.constant 0 : index
    %10 = vector.load %arg5[%c0_8, %c0_9] : memref<1x128xf32, #tpu.memory_space<vmem>>, vector<1x128xf32>
    %11 = arith.truncf %8 : vector<8x128xf32> to vector<8x128xbf16>
    %cst_10 = arith.constant dense<0.000000e+00> : vector<8x128xf32>
    %12 = tpu.matmul %11, %9, %cst_10 {dimension_numbers = #tpu.dot_dimension_numbers<[1], [0], [0], [1], [0, 0, 1, 1], [], []>} : vector<8x128xbf16>, vector<128x128xbf16>, vector<8x128xf32> -> vector<8x128xf32>
    %13 = vector.broadcast %10 : vector<1x128xf32> to vector<8x128xf32>
    %14 = arith.addf %12, %13 : vector<8x128xf32>
    %c0_11 = arith.constant 0 : index
    %c0_12 = arith.constant 0 : index
    %15 = vector.load %arg6[%c0_11, %c0_12] : memref<8x128xf32, #tpu.memory_space<vmem>>, vector<8x128xf32>
    tpu.vector_store %arg6[%c0_11, %c0_12], %14 {strides = array<i32>} : memref<8x128xf32, #tpu.memory_space<vmem>>, vector<8x128xf32>,
    return
  }
  func.func @transform_0(%arg0: i32) -> (i32, i32) {
    %c0_i32 = arith.constant 0 : i32
    %c0_i32_0 = arith.constant 0 : i32
    return %arg0, %c0_i32 : i32, i32
  }
  func.func @transform_1(%arg0: i32) -> (i32, i32) {
    %c0_i32 = arith.constant 0 : i32
    %c0_i32_0 = arith.constant 0 : i32
    %c0_i32_1 = arith.constant 0 : i32
    return %c0_i32, %c0_i32_0 : i32, i32
  }
  func.func @transform_2(%arg0: i32) -> (i32, i32) {
    %c0_i32 = arith.constant 0 : i32
    %c0_i32_0 = arith.constant 0 : i32
    %c0_i32_1 = arith.constant 0 : i32
    return %c0_i32, %c0_i32_0 : i32, i32
  }
  func.func @transform_3(%arg0: i32) -> (i32, i32) {
    %c0_i32 = arith.constant 0 : i32
    %c0_i32_0 = arith.constant 0 : i32
    %c0_i32_1 = arith.constant 0 : i32
    return %c0_i32, %c0_i32_0 : i32, i32
  }
  func.func @transform_4(%arg0: i32) -> (i32, i32) {
    %c0_i32 = arith.constant 0 : i32
    %c0_i32_0 = arith.constant 0 : i32
    %c0_i32_1 = arith.constant 0 : i32
    return %c0_i32, %c0_i32_0 : i32, i32
  }
  func.func @transform_5(%arg0: i32) -> (i32, i32) {
    %c0_i32 = arith.constant 0 : i32
    %c0_i32_0 = arith.constant 0 : i32
    return %arg0, %c0_i32 : i32, i32
  }
}

module attributes {stable_mosaic.version = 11 : i64} {
  func.func @_poly_linear_kernel(%arg0: i32, %arg1: memref<8x128xf32, #tpu.memory_space<vmem>>, %arg2: memref<128x128xbf16, #tpu.memory_space<vmem>>, %arg3: memref<1x128xf32, #tpu.memory_space<vmem>>, %arg4: memref<128x128xbf16, #tpu.memory_space<vmem>>, %arg5: memref<1x128xf32, #tpu.memory_space<vmem>>, %arg6: memref<8x128xf32, #tpu.memory_space<vmem>>) attributes {dimension_semantics = [#tpu.dimension_semantics<parallel>], iteration_bounds = array<i64: 1>, scalar_prefetch = 0 : i64, scratch_operands = 0 : i64, tpu.core_type = #tpu.core_type<tc>, window_params = [{transform_indices = @transform_0, window_bounds = array<i64: 8, 128>}, {pipeline_mode = #tpu.pipeline_mode<synchronous>, transform_indices = @transform_1, window_bounds = array<i64: 128, 128>}, {pipeline_mode = #tpu.pipeline_mode<synchronous>, transform_indices = @transform_2, window_bounds = array<i64: 1, 128>}, {pipeline_mode = #tpu.pipeline_mode<synchronous>, transform_indices = @transform_3, window_bounds = array<i64: 128, 128>}, {pipeline_mode = #tpu.pipeline_mode<synchronous>, transform_indices = @transform_4, window_bounds = array<i64: 1, 128>}, {transform_indices = @transform_5, window_bounds = array<i64: 8, 128>}]} {
    %c0 = arith.constant 0 : index
    %c0_0 = arith.constant 0 : index
    %0 = vector.load %arg1[%c0, %c0_0] : memref<8x128xf32, #tpu.memory_space<vmem>>, vector<8x128xf32>
    %c0_1 = arith.constant 0 : index
    %c0_2 = arith.constant 0 : index
    %1 = vector.load %arg2[%c0_1, %c0_2] : memref<128x128xbf16, #tpu.memory_space<vmem>>, vector<128x128xbf16>
    %c0_3 = arith.constant 0 : index
    %c0_4 = arith.constant 0 : index
    %2 = vector.load %arg3[%c0_3, %c0_4] : memref<1x128xf32, #tpu.memory_space<vmem>>, vector<1x128xf32>
    %3 = arith.truncf %0 : vector<8x128xf32> to vector<8x128xbf16>
    %cst = arith.constant dense<0.000000e+00> : vector<8x128xf32>
    %4 = tpu.matmul %3, %1, %cst {dimension_numbers = #tpu.dot_dimension_numbers<[1], [0], [0], [1], [0, 0, 1, 1], [], []>} : vector<8x128xbf16>, vector<128x128xbf16>, vector<8x128xf32> -> vector<8x128xf32>
    %5 = vector.broadcast %2 : vector<1x128xf32> to vector<8x128xf32>
    %6 = arith.addf %4, %5 : vector<8x128xf32>
    %cst_5 = arith.constant 0.000000e+00 : f32
    %7 = vector.broadcast %cst_5 : f32 to vector<8x128xf32>
    %8 = arith.maximumf %6, %7 : vector<8x128xf32>
    %c0_6 = arith.constant 0 : index
    %c0_7 = arith.constant 0 : index
    %9 = vector.load %arg4[%c0_6, %c0_7] : memref<128x128xbf16, #tpu.memory_space<vmem>>, vector<128x128xbf16>
    %c0_8 = arith.constant 0 : index
    %c0_9 = arith.constant 0 : index
    %10 = vector.load %arg5[%c0_8, %c0_9] : memref<1x128xf32, #tpu.memory_space<vmem>>, vector<1x128xf32>
    %11 = arith.truncf %8 : vector<8x128xf32> to vector<8x128xbf16>
    %cst_10 = arith.constant dense<0.000000e+00> : vector<8x128xf32>
    %12 = tpu.matmul %11, %9, %cst_10 {dimension_numbers = #tpu.dot_dimension_numbers<[1], [0], [0], [1], [0, 0, 1, 1], [], []>} : vector<8x128xbf16>, vector<128x128xbf16>, vector<8x128xf32> -> vector<8x128xf32>
    %13 = vector.broadcast %10 : vector<1x128xf32> to vector<8x128xf32>
    %14 = arith.addf %12, %13 : vector<8x128xf32>
    %c0_11 = arith.constant 0 : index
    %c0_12 = arith.constant 0 : index
    %15 = vector.load %arg6[%c0_11, %c0_12] : memref<8x128xf32, #tpu.memory_space<vmem>>, vector<8x128xf32>
    tpu.vector_store %arg6[%c0_11, %c0_12], %14 {strides = array<i32>} : memref<8x128xf32, #tpu.memory_space<vmem>>, vector<8x128xf32>,
    return
  }
  func.func @transform_0(%arg0: i32) -> (i32, i32) {
    %c0_i32 = arith.constant 0 : i32
    %c0_i32_0 = arith.constant 0 : i32
    return %arg0, %c0_i32 : i32, i32
  }
  func.func @transform_1(%arg0: i32) -> (i32, i32) {
    %c0_i32 = arith.constant 0 : i32
    %c0_i32_0 = arith.constant 0 : i32
    %c0_i32_1 = arith.constant 0 : i32
    return %c0_i32, %c0_i32_0 : i32, i32
  }
  func.func @transform_2(%arg0: i32) -> (i32, i32) {
    %c0_i32 = arith.constant 0 : i32
    %c0_i32_0 = arith.constant 0 : i32
    %c0_i32_1 = arith.constant 0 : i32
    return %c0_i32, %c0_i32_0 : i32, i32
  }
  func.func @transform_3(%arg0: i32) -> (i32, i32) {
    %c0_i32 = arith.constant 0 : i32
    %c0_i32_0 = arith.constant 0 : i32
    %c0_i32_1 = arith.constant 0 : i32
    return %c0_i32, %c0_i32_0 : i32, i32
  }
  func.func @transform_4(%arg0: i32) -> (i32, i32) {
    %c0_i32 = arith.constant 0 : i32
    %c0_i32_0 = arith.constant 0 : i32
    %c0_i32_1 = arith.constant 0 : i32
    return %c0_i32, %c0_i32_0 : i32, i32
  }
  func.func @transform_5(%arg0: i32) -> (i32, i32) {
    %c0_i32 = arith.constant 0 : i32
    %c0_i32_0 = arith.constant 0 : i32
    return %arg0, %c0_i32 : i32, i32
  }
}

</mosaic_0001>

<llo_original>
// kernel: tpu_custom_call.1
$region0: #{tpu_custom_call.1}
  #allocation0 [shape = 'u32[]', space=smem, size = 0x4, offset = 0x4, fixed_abs, tag = 'smem constant byte address 0x4 - core index']
  #allocation1 [shape = 'u32[144,128]{1,0:T(1,128)}', space=vmem, size = 0x12000, scoped, tag = 'internal scratch']
  %s0 = inlined_call_operand.hbm [shape: f32[8,128], index: 0, kind: input, shape index: {}]
  %s1 = inlined_call_operand.hbm [shape: bf16[128,128], index: 1, kind: input, shape index: {}]
  %s2 = inlined_call_operand.vmem [shape: f32[1,128], index: 2, kind: input, shape index: {}]
  %s3 = inlined_call_operand.hbm [shape: bf16[128,128], index: 3, kind: input, shape index: {}]
  %s4 = inlined_call_operand.vmem [shape: f32[1,128], index: 4, kind: input, shape index: {}]
  %s5 = inlined_call_operand.hbm [shape: f32[8,128], index: 5, kind: output, shape index: {}]
  %s6 = sld [smem:[#allocation0]]
  $region42: #{tpu_custom_call.1} parent=0
    _
  %s8 = ssub.s32 1, %s6
  %s9 = scalar_select 0, %s8, %s6
  $region1: #{tpu_custom_call.1} parent=0
    #allocation2 [shape = 'u8[4096]{0}', space=vmem, size = 0x1000, scoped, tag = 'input window, operand 0, single buffered']
    #allocation3 [shape = 's32[1]{0}', space=sflag, size = 0x4, scoped, tag = 'scoped memory for tpu_custom_call.1']
    #allocation4 [shape = 's32[1]{0}', space=sflag, size = 0x4, scoped, tag = 'scoped memory for tpu_custom_call.1']
    #allocation5 [shape = 'u8[32768]{0}', space=vmem, size = 0x8000, scoped, tag = 'input window, operand 1, single buffered']
    #allocation6 [shape = 's32[1]{0}', space=sflag, size = 0x4, scoped, tag = 'scoped memory for tpu_custom_call.1']
    #allocation7 [shape = 'u8[32768]{0}', space=vmem, size = 0x8000, scoped, tag = 'input window, operand 3, single buffered']
    #allocation8 [shape = 'u8[4096]{0}', space=vmem, size = 0x1000, scoped, tag = 'output window, operand 0, single buffered']
    %10 = vsyncpa [#allocation3], 0
    %11 = vsyncpa [#allocation6], 0
    %12 = vsyncpa [#allocation4], 0
    // Predicated region
    $region2: #{tpu_custom_call.1} parent=1 // pred_check
      _
    $region3: #{tpu_custom_call.1} parent=1 // pred_check_branch
      %14 = sbr.rel (0) target = $region5
    $region4: #{tpu_custom_call.1} parent=1 // pred_region
      %s16 = ssub.s32 128, 128
      %17 = vsyncadd [#allocation3], %s16
      %s19 = sshll.u32 [#allocation2], 4
      %s20 = int_to_ptr.vmem [resolvable:$true] %s19
      %22 = dma.hbm_to_vmem [thread:$0]  %s0, 128, %s20, [#allocation3]
    $region5: #{tpu_custom_call.1} parent=1 // pred_fallthru
      _
    // Predicated region
    $region6: #{tpu_custom_call.1} parent=1 // pred_check
      _
    $region7: #{tpu_custom_call.1} parent=1 // pred_check_branch
      %24 = sbr.rel (0) target = $region9
    $region8: #{tpu_custom_call.1} parent=1 // pred_region
      %s26 = ssub.s32 1024, 1024
      %27 = vsyncadd [#allocation6], %s26
      %s28 = sshll.u32 [#allocation5], 4
      %s29 = int_to_ptr.vmem [resolvable:$true] %s28
      %34 = dma.hbm_to_vmem [thread:$0]  %s1, 1024, %s29, [#allocation6], 64, 64, 4
    $region9: #{tpu_custom_call.1} parent=1 // pred_fallthru
      _
    // Predicated region
    $region10: #{tpu_custom_call.1} parent=1 // pred_check
      _
    $region11: #{tpu_custom_call.1} parent=1 // pred_check_branch
      %36 = sbr.rel (0) target = $region13
    $region12: #{tpu_custom_call.1} parent=1 // pred_region
      _
    $region13: #{tpu_custom_call.1} parent=1 // pred_fallthru
      _
    // Predicated region
    $region14: #{tpu_custom_call.1} parent=1 // pred_check
      _
    $region15: #{tpu_custom_call.1} parent=1 // pred_check_branch
      %38 = sbr.rel (0) target = $region17
    $region16: #{tpu_custom_call.1} parent=1 // pred_region
      %s40 = ssub.s32 1024, 1024
      %41 = vsyncadd [#allocation6], %s40
      %s42 = sshll.u32 [#allocation7], 4
      %s43 = int_to_ptr.vmem [resolvable:$true] %s42
      %48 = dma.hbm_to_vmem [thread:$0]  %s3, 1024, %s43, [#allocation6], 64, 64, 4
    $region17: #{tpu_custom_call.1} parent=1 // pred_fallthru
      _
    // Predicated region
    $region18: #{tpu_custom_call.1} parent=1 // pred_check
      _
    $region19: #{tpu_custom_call.1} parent=1 // pred_check_branch
      %50 = sbr.rel (0) target = $region21
    $region20: #{tpu_custom_call.1} parent=1 // pred_region
      _
    $region21: #{tpu_custom_call.1} parent=1 // pred_fallthru
      _
    // Predicated region
    $region22: #{tpu_custom_call.1} parent=1 // pred_check
      _
    $region23: #{tpu_custom_call.1} parent=1 // pred_check_branch
      %52 = sbr.rel (0) target = $region25
    $region24: #{tpu_custom_call.1} parent=1 // pred_region
      %53 = dma.done [#allocation3], 128
    $region25: #{tpu_custom_call.1} parent=1 // pred_fallthru
      _
    // Predicated region
    $region26: #{tpu_custom_call.1} parent=1 // pred_check
      _
    $region27: #{tpu_custom_call.1} parent=1 // pred_check_branch
      %55 = sbr.rel (0) target = $region29
    $region28: #{tpu_custom_call.1} parent=1 // pred_region
      %56 = dma.done [#allocation6], 1024
    $region29: #{tpu_custom_call.1} parent=1 // pred_fallthru
      _
    // Predicated region
    $region30: #{tpu_custom_call.1} parent=1 // pred_check
      _
    $region31: #{tpu_custom_call.1} parent=1 // pred_check_branch
      %58 = sbr.rel (0) target = $region33
    $region32: #{tpu_custom_call.1} parent=1 // pred_region
      %59 = dma.done [#allocation6], 1024
    $region33: #{tpu_custom_call.1} parent=1 // pred_fallthru
      _
    %v61 = vld [vmem:[#allocation2] sm:$0xff]
    %v62 = vld [vmem:[#allocation5] sm:$0xf]
    %v63 = vld [vmem:[#allocation5 + $0x4] sm:$0xf]
    %v64 = vld [vmem:[#allocation5 + $0x8] sm:$0xf]
    %v65 = vld [vmem:[#allocation5 + $0xc] sm:$0xf]
    %v66 = vld [vmem:[#allocation5 + $0x10] sm:$0xf]
    %v67 = vld [vmem:[#allocation5 + $0x14] sm:$0xf]
    %v68 = vld [vmem:[#allocation5 + $0x18] sm:$0xf]
    %v69 = vld [vmem:[#allocation5 + $0x1c] sm:$0xf]
    %v70 = vld [vmem:[#allocation5 + $0x20] sm:$0xf]
    %v71 = vld [vmem:[#allocation5 + $0x24] sm:$0xf]
    %v72 = vld [vmem:[#allocation5 + $0x28] sm:$0xf]
    %v73 = vld [vmem:[#allocation5 + $0x2c] sm:$0xf]
    %v74 = vld [vmem:[#allocation5 + $0x30] sm:$0xf]
    %v75 = vld [vmem:[#allocation5 + $0x34] sm:$0xf]
    %v76 = vld [vmem:[#allocation5 + $0x38] sm:$0xf]
    %v77 = vld [vmem:[#allocation5 + $0x3c] sm:$0xf]
    %v78 = vld [vmem:[%s2] sm:$0x1]
    %v79 = vpack.c.bf16 %v61, %v61
    %v81 = vlaneseq
    %v82 = vshrl.u32 %v81, 7
    %v83 = vsub.s32 0, %v82
    %v84 = vrot.slane %v78, %v83
    %v102 = vunpack.c.l.b16 %v62
    %v103 = vunpack.c.l.b16 %v63
    %v104 = vunpack.c.l.b16 %v64
    %v105 = vunpack.c.l.b16 %v65
    %v106 = vunpack.c.l.b16 %v66
    %v107 = vunpack.c.l.b16 %v67
    %v108 = vunpack.c.l.b16 %v68
    %v109 = vunpack.c.l.b16 %v69
    %v110 = vunpack.c.l.b16 %v70
    %v111 = vunpack.c.l.b16 %v71
    %v112 = vunpack.c.l.b16 %v72
    %v113 = vunpack.c.l.b16 %v73
    %v114 = vunpack.c.l.b16 %v74
    %v115 = vunpack.c.l.b16 %v75
    %v116 = vunpack.c.l.b16 %v76
    %v117 = vunpack.c.l.b16 %v77
    %v118 = vpack.c.b16 %v103, %v102
    %v119 = vpack.c.b16 %v105, %v104
    %v120 = vpack.c.b16 %v107, %v106
    %v121 = vpack.c.b16 %v109, %v108
    %v122 = vpack.c.b16 %v111, %v110
    %v123 = vpack.c.b16 %v113, %v112
    %v124 = vpack.c.b16 %v115, %v114
    %v125 = vpack.c.b16 %v117, %v116
    %134 = vmatprep.subr.bf16.mxu0 0
    %135 = vmatpush1.bf16.msra.mxu0 %v118
    %136 = vmatprep.subr.bf16.mxu0 0
    %137 = vmatpush1.bf16.msra.mxu0 %v119
    %138 = vmatprep.subr.bf16.mxu0 0
    %139 = vmatpush1.bf16.msra.mxu0 %v120
    %140 = vmatprep.subr.bf16.mxu0 0
    %141 = vmatpush1.bf16.msra.mxu0 %v121
    %142 = vmatprep.subr.bf16.mxu0 0
    %143 = vmatpush1.bf16.msra.mxu0 %v122
    %144 = vmatprep.subr.bf16.mxu0 0
    %145 = vmatpush1.bf16.msra.mxu0 %v123
    %146 = vmatprep.subr.bf16.mxu0 0
    %147 = vmatpush1.bf16.msra.mxu0 %v124
    %148 = vmatprep.subr.bf16.mxu0 0
    %149 = vmatpush1.bf16.msra.mxu0 %v125
    %150 = vmatprep.subr.bf16.mxu0 0
    %151 = vmatpush1.bf16.msra.mxu0 0
    %152 = vmatprep.subr.bf16.mxu0 0
    %153 = vmatpush1.bf16.msra.mxu0 0
    %154 = vmatprep.subr.bf16.mxu0 0
    %155 = vmatpush1.bf16.msra.mxu0 0
    %156 = vmatprep.subr.bf16.mxu0 0
    %157 = vmatpush1.bf16.msra.mxu0 0
    %158 = vmatprep.subr.bf16.mxu0 0
    %159 = vmatpush1.bf16.msra.mxu0 0
    %160 = vmatprep.subr.bf16.mxu0 0
    %161 = vmatpush1.bf16.msra.mxu0 0
    %162 = vmatprep.subr.bf16.mxu0 0
    %163 = vmatpush1.bf16.msra.mxu0 0
    %164 = vmatprep.subr.bf16.mxu0 0
    %165 = vmatpush1.bf16.msra.mxu0 0
    %166 = vmatprep.mubr.bf16.mxu0 0
    %167 = vmatmul.mubr.bf16.gmra.mrb[0].mxu0 %v79
    %v168 = vpop.f32.mrb[0].mxu0
    %v169 = vadd.f32 %v84, %v168
    %v170 = vpop.f32.mrb[0].mxu0
    %v171 = vpop.f32.mrb[0].mxu0
    %v172 = vpop.f32.mrb[0].mxu0
    %173 = vdwg.mxu0
    %v174 = vmax.f32 %v169, 0.0
    %v175 = vld [vmem:[#allocation7] sm:$0xf]
    %v176 = vld [vmem:[#allocation7 + $0x4] sm:$0xf]
    %v177 = vld [vmem:[#allocation7 + $0x8] sm:$0xf]
    %v178 = vld [vmem:[#allocation7 + $0xc] sm:$0xf]
    %v179 = vld [vmem:[#allocation7 + $0x10] sm:$0xf]
    %v180 = vld [vmem:[#allocation7 + $0x14] sm:$0xf]
    %v181 = vld [vmem:[#allocation7 + $0x18] sm:$0xf]
    %v182 = vld [vmem:[#allocation7 + $0x1c] sm:$0xf]
    %v183 = vld [vmem:[#allocation7 + $0x20] sm:$0xf]
    %v184 = vld [vmem:[#allocation7 + $0x24] sm:$0xf]
    %v185 = vld [vmem:[#allocation7 + $0x28] sm:$0xf]
    %v186 = vld [vmem:[#allocation7 + $0x2c] sm:$0xf]
    %v187 = vld [vmem:[#allocation7 + $0x30] sm:$0xf]
    %v188 = vld [vmem:[#allocation7 + $0x34] sm:$0xf]
    %v189 = vld [vmem:[#allocation7 + $0x38] sm:$0xf]
    %v190 = vld [vmem:[#allocation7 + $0x3c] sm:$0xf]
    %v191 = vld [vmem:[%s4] sm:$0x1]
    %v192 = vpack.c.bf16 %v174, %v174
    %v194 = vlaneseq
    %v195 = vshrl.u32 %v194, 7
    %v196 = vsub.s32 0, %v195
    %v197 = vrot.slane %v191, %v196
    %v215 = vunpack.c.l.b16 %v175
    %v216 = vunpack.c.l.b16 %v176
    %v217 = vunpack.c.l.b16 %v177
    %v218 = vunpack.c.l.b16 %v178
    %v219 = vunpack.c.l.b16 %v179
    %v220 = vunpack.c.l.b16 %v180
    %v221 = vunpack.c.l.b16 %v181
    %v222 = vunpack.c.l.b16 %v182
    %v223 = vunpack.c.l.b16 %v183
    %v224 = vunpack.c.l.b16 %v184
    %v225 = vunpack.c.l.b16 %v185
    %v226 = vunpack.c.l.b16 %v186
    %v227 = vunpack.c.l.b16 %v187
    %v228 = vunpack.c.l.b16 %v188
    %v229 = vunpack.c.l.b16 %v189
    %v230 = vunpack.c.l.b16 %v190
    %v231 = vpack.c.b16 %v216, %v215
    %v232 = vpack.c.b16 %v218, %v217
    %v233 = vpack.c.b16 %v220, %v219
    %v234 = vpack.c.b16 %v222, %v221
    %v235 = vpack.c.b16 %v224, %v223
    %v236 = vpack.c.b16 %v226, %v225
    %v237 = vpack.c.b16 %v228, %v227
    %v238 = vpack.c.b16 %v230, %v229
    %247 = vmatprep.subr.bf16.mxu0 0
    %248 = vmatpush1.bf16.msra.mxu0 %v231
    %249 = vmatprep.subr.bf16.mxu0 0
    %250 = vmatpush1.bf16.msra.mxu0 %v232
    %251 = vmatprep.subr.bf16.mxu0 0
    %252 = vmatpush1.bf16.msra.mxu0 %v233
    %253 = vmatprep.subr.bf16.mxu0 0
    %254 = vmatpush1.bf16.msra.mxu0 %v234
    %255 = vmatprep.subr.bf16.mxu0 0
    %256 = vmatpush1.bf16.msra.mxu0 %v235
    %257 = vmatprep.subr.bf16.mxu0 0
    %258 = vmatpush1.bf16.msra.mxu0 %v236
    %259 = vmatprep.subr.bf16.mxu0 0
    %260 = vmatpush1.bf16.msra.mxu0 %v237
    %261 = vmatprep.subr.bf16.mxu0 0
    %262 = vmatpush1.bf16.msra.mxu0 %v238
    %263 = vmatprep.subr.bf16.mxu0 0
    %264 = vmatpush1.bf16.msra.mxu0 0
    %265 = vmatprep.subr.bf16.mxu0 0
    %266 = vmatpush1.bf16.msra.mxu0 0
    %267 = vmatprep.subr.bf16.mxu0 0
    %268 = vmatpush1.bf16.msra.mxu0 0
    %269 = vmatprep.subr.bf16.mxu0 0
    %270 = vmatpush1.bf16.msra.mxu0 0
    %271 = vmatprep.subr.bf16.mxu0 0
    %272 = vmatpush1.bf16.msra.mxu0 0
    %273 = vmatprep.subr.bf16.mxu0 0
    %274 = vmatpush1.bf16.msra.mxu0 0
    %275 = vmatprep.subr.bf16.mxu0 0
    %276 = vmatpush1.bf16.msra.mxu0 0
    %277 = vmatprep.subr.bf16.mxu0 0
    %278 = vmatpush1.bf16.msra.mxu0 0
    %279 = vmatprep.mubr.bf16.mxu0 0
    %280 = vmatmul.mubr.bf16.gmra.mrb[0].mxu0 %v192
    %v281 = vpop.f32.mrb[0].mxu0
    %v282 = vadd.f32 %v197, %v281
    %v283 = vpop.f32.mrb[0].mxu0
    %v284 = vpop.f32.mrb[0].mxu0
    %v285 = vpop.f32.mrb[0].mxu0
    %286 = vdwg.mxu0
    %287 = vst [vmem:[#allocation8] sm:$0xff] %v282
    // Predicated region
    $region34: #{tpu_custom_call.1} parent=1 // pred_check
      _
    $region35: #{tpu_custom_call.1} parent=1 // pred_check_branch
      %289 = sbr.rel (0) target = $region37
    $region36: #{tpu_custom_call.1} parent=1 // pred_region
      %s291 = ssub.s32 128, 128
      %292 = vsyncadd [#allocation4], %s291
      %s294 = sshll.u32 [#allocation8], 4
      %s295 = int_to_ptr.vmem [resolvable:$true] %s294
      %297 = dma.vmem_to_hbm [thread:$0]  %s295, 128, %s5, [#allocation4]
    $region37: #{tpu_custom_call.1} parent=1 // pred_fallthru
      _
    // Predicated region
    $region38: #{tpu_custom_call.1} parent=1 // pred_check
      _
    $region39: #{tpu_custom_call.1} parent=1 // pred_check_branch
      %299 = sbr.rel (0) target = $region41
    $region40: #{tpu_custom_call.1} parent=1 // pred_region
      %300 = dma.done [#allocation4], 128
    $region41: #{tpu_custom_call.1} parent=1 // pred_fallthru
      _
    %301 = vsyncpa [#allocation3], 1
    %302 = vsyncpa [#allocation6], 1
    %303 = vsyncpa [#allocation4], 1

// kernel: tpu_custom_call.1
$region0: #{tpu_custom_call.1}
  #allocation0 [shape = 'u32[]', space=smem, size = 0x4, offset = 0x4, fixed_abs, tag = 'smem constant byte address 0x4 - core index']
  #allocation1 [shape = 'u32[144,128]{1,0:T(1,128)}', space=vmem, size = 0x12000, scoped, tag = 'internal scratch']
  %s0 = inlined_call_operand.hbm [shape: f32[8,128], index: 0, kind: input, shape index: {}]
  %s1 = inlined_call_operand.hbm [shape: bf16[128,128], index: 1, kind: input, shape index: {}]
  %s2 = inlined_call_operand.vmem [shape: f32[1,128], index: 2, kind: input, shape index: {}]
  %s3 = inlined_call_operand.hbm [shape: bf16[128,128], index: 3, kind: input, shape index: {}]
  %s4 = inlined_call_operand.vmem [shape: f32[1,128], index: 4, kind: input, shape index: {}]
  %s5 = inlined_call_operand.hbm [shape: f32[8,128], index: 5, kind: output, shape index: {}]
  %s6 = sld [smem:[#allocation0]]
  $region42: #{tpu_custom_call.1} parent=0
    _
  %s8 = ssub.s32 1, %s6
  %s9 = scalar_select 0, %s8, %s6
  $region1: #{tpu_custom_call.1} parent=0
    #allocation2 [shape = 'u8[4096]{0}', space=vmem, size = 0x1000, scoped, tag = 'input window, operand 0, single buffered']
    #allocation3 [shape = 's32[1]{0}', space=sflag, size = 0x4, scoped, tag = 'scoped memory for tpu_custom_call.1']
    #allocation4 [shape = 's32[1]{0}', space=sflag, size = 0x4, scoped, tag = 'scoped memory for tpu_custom_call.1']
    #allocation5 [shape = 'u8[32768]{0}', space=vmem, size = 0x8000, scoped, tag = 'input window, operand 1, single buffered']
    #allocation6 [shape = 's32[1]{0}', space=sflag, size = 0x4, scoped, tag = 'scoped memory for tpu_custom_call.1']
    #allocation7 [shape = 'u8[32768]{0}', space=vmem, size = 0x8000, scoped, tag = 'input window, operand 3, single buffered']
    #allocation8 [shape = 'u8[4096]{0}', space=vmem, size = 0x1000, scoped, tag = 'output window, operand 0, single buffered']
    %10 = vsyncpa [#allocation3], 0
    %11 = vsyncpa [#allocation6], 0
    %12 = vsyncpa [#allocation4], 0
    // Predicated region
    $region2: #{tpu_custom_call.1} parent=1 // pred_check
      _
    $region3: #{tpu_custom_call.1} parent=1 // pred_check_branch
      %14 = sbr.rel (0) target = $region5
    $region4: #{tpu_custom_call.1} parent=1 // pred_region
      %s16 = ssub.s32 128, 128
      %17 = vsyncadd [#allocation3], %s16
      %s19 = sshll.u32 [#allocation2], 4
      %s20 = int_to_ptr.vmem [resolvable:$true] %s19
      %22 = dma.hbm_to_vmem [thread:$0]  %s0, 128, %s20, [#allocation3]
    $region5: #{tpu_custom_call.1} parent=1 // pred_fallthru
      _
    // Predicated region
    $region6: #{tpu_custom_call.1} parent=1 // pred_check
      _
    $region7: #{tpu_custom_call.1} parent=1 // pred_check_branch
      %24 = sbr.rel (0) target = $region9
    $region8: #{tpu_custom_call.1} parent=1 // pred_region
      %s26 = ssub.s32 1024, 1024
      %27 = vsyncadd [#allocation6], %s26
      %s28 = sshll.u32 [#allocation5], 4
      %s29 = int_to_ptr.vmem [resolvable:$true] %s28
      %34 = dma.hbm_to_vmem [thread:$0]  %s1, 1024, %s29, [#allocation6], 64, 64, 4
    $region9: #{tpu_custom_call.1} parent=1 // pred_fallthru
      _
    // Predicated region
    $region10: #{tpu_custom_call.1} parent=1 // pred_check
      _
    $region11: #{tpu_custom_call.1} parent=1 // pred_check_branch
      %36 = sbr.rel (0) target = $region13
    $region12: #{tpu_custom_call.1} parent=1 // pred_region
      _
    $region13: #{tpu_custom_call.1} parent=1 // pred_fallthru
      _
    // Predicated region
    $region14: #{tpu_custom_call.1} parent=1 // pred_check
      _
    $region15: #{tpu_custom_call.1} parent=1 // pred_check_branch
      %38 = sbr.rel (0) target = $region17
    $region16: #{tpu_custom_call.1} parent=1 // pred_region
      %s40 = ssub.s32 1024, 1024
      %41 = vsyncadd [#allocation6], %s40
      %s42 = sshll.u32 [#allocation7], 4
      %s43 = int_to_ptr.vmem [resolvable:$true] %s42
      %48 = dma.hbm_to_vmem [thread:$0]  %s3, 1024, %s43, [#allocation6], 64, 64, 4
    $region17: #{tpu_custom_call.1} parent=1 // pred_fallthru
      _
    // Predicated region
    $region18: #{tpu_custom_call.1} parent=1 // pred_check
      _
    $region19: #{tpu_custom_call.1} parent=1 // pred_check_branch
      %50 = sbr.rel (0) target = $region21
    $region20: #{tpu_custom_call.1} parent=1 // pred_region
      _
    $region21: #{tpu_custom_call.1} parent=1 // pred_fallthru
      _
    // Predicated region
    $region22: #{tpu_custom_call.1} parent=1 // pred_check
      _
    $region23: #{tpu_custom_call.1} parent=1 // pred_check_branch
      %52 = sbr.rel (0) target = $region25
    $region24: #{tpu_custom_call.1} parent=1 // pred_region
      %53 = dma.done [#allocation3], 128
    $region25: #{tpu_custom_call.1} parent=1 // pred_fallthru
      _
    // Predicated region
    $region26: #{tpu_custom_call.1} parent=1 // pred_check
      _
    $region27: #{tpu_custom_call.1} parent=1 // pred_check_branch
      %55 = sbr.rel (0) target = $region29
    $region28: #{tpu_custom_call.1} parent=1 // pred_region
      %56 = dma.done [#allocation6], 1024
    $region29: #{tpu_custom_call.1} parent=1 // pred_fallthru
      _
    // Predicated region
    $region30: #{tpu_custom_call.1} parent=1 // pred_check
      _
    $region31: #{tpu_custom_call.1} parent=1 // pred_check_branch
      %58 = sbr.rel (0) target = $region33
    $region32: #{tpu_custom_call.1} parent=1 // pred_region
      %59 = dma.done [#allocation6], 1024
    $region33: #{tpu_custom_call.1} parent=1 // pred_fallthru
      _
    %v61 = vld [vmem:[#allocation2] sm:$0xff]
    %v62 = vld [vmem:[#allocation5] sm:$0xf]
    %v63 = vld [vmem:[#allocation5 + $0x4] sm:$0xf]
    %v64 = vld [vmem:[#allocation5 + $0x8] sm:$0xf]
    %v65 = vld [vmem:[#allocation5 + $0xc] sm:$0xf]
    %v66 = vld [vmem:[#allocation5 + $0x10] sm:$0xf]
    %v67 = vld [vmem:[#allocation5 + $0x14] sm:$0xf]
    %v68 = vld [vmem:[#allocation5 + $0x18] sm:$0xf]
    %v69 = vld [vmem:[#allocation5 + $0x1c] sm:$0xf]
    %v70 = vld [vmem:[#allocation5 + $0x20] sm:$0xf]
    %v71 = vld [vmem:[#allocation5 + $0x24] sm:$0xf]
    %v72 = vld [vmem:[#allocation5 + $0x28] sm:$0xf]
    %v73 = vld [vmem:[#allocation5 + $0x2c] sm:$0xf]
    %v74 = vld [vmem:[#allocation5 + $0x30] sm:$0xf]
    %v75 = vld [vmem:[#allocation5 + $0x34] sm:$0xf]
    %v76 = vld [vmem:[#allocation5 + $0x38] sm:$0xf]
    %v77 = vld [vmem:[#allocation5 + $0x3c] sm:$0xf]
    %v78 = vld [vmem:[%s2] sm:$0x1]
    %v79 = vpack.c.bf16 %v61, %v61
    %v81 = vlaneseq
    %v82 = vshrl.u32 %v81, 7
    %v83 = vsub.s32 0, %v82
    %v84 = vrot.slane %v78, %v83
    %v102 = vunpack.c.l.b16 %v62
    %v103 = vunpack.c.l.b16 %v63
    %v104 = vunpack.c.l.b16 %v64
    %v105 = vunpack.c.l.b16 %v65
    %v106 = vunpack.c.l.b16 %v66
    %v107 = vunpack.c.l.b16 %v67
    %v108 = vunpack.c.l.b16 %v68
    %v109 = vunpack.c.l.b16 %v69
    %v110 = vunpack.c.l.b16 %v70
    %v111 = vunpack.c.l.b16 %v71
    %v112 = vunpack.c.l.b16 %v72
    %v113 = vunpack.c.l.b16 %v73
    %v114 = vunpack.c.l.b16 %v74
    %v115 = vunpack.c.l.b16 %v75
    %v116 = vunpack.c.l.b16 %v76
    %v117 = vunpack.c.l.b16 %v77
    %v118 = vpack.c.b16 %v103, %v102
    %v119 = vpack.c.b16 %v105, %v104
    %v120 = vpack.c.b16 %v107, %v106
    %v121 = vpack.c.b16 %v109, %v108
    %v122 = vpack.c.b16 %v111, %v110
    %v123 = vpack.c.b16 %v113, %v112
    %v124 = vpack.c.b16 %v115, %v114
    %v125 = vpack.c.b16 %v117, %v116
    %134 = vmatprep.subr.bf16.mxu0 0
    %135 = vmatpush1.bf16.msra.mxu0 %v118
    %136 = vmatprep.subr.bf16.mxu0 0
    %137 = vmatpush1.bf16.msra.mxu0 %v119
    %138 = vmatprep.subr.bf16.mxu0 0
    %139 = vmatpush1.bf16.msra.mxu0 %v120
    %140 = vmatprep.subr.bf16.mxu0 0
    %141 = vmatpush1.bf16.msra.mxu0 %v121
    %142 = vmatprep.subr.bf16.mxu0 0
    %143 = vmatpush1.bf16.msra.mxu0 %v122
    %144 = vmatprep.subr.bf16.mxu0 0
    %145 = vmatpush1.bf16.msra.mxu0 %v123
    %146 = vmatprep.subr.bf16.mxu0 0
    %147 = vmatpush1.bf16.msra.mxu0 %v124
    %148 = vmatprep.subr.bf16.mxu0 0
    %149 = vmatpush1.bf16.msra.mxu0 %v125
    %150 = vmatprep.subr.bf16.mxu0 0
    %151 = vmatpush1.bf16.msra.mxu0 0
    %152 = vmatprep.subr.bf16.mxu0 0
    %153 = vmatpush1.bf16.msra.mxu0 0
    %154 = vmatprep.subr.bf16.mxu0 0
    %155 = vmatpush1.bf16.msra.mxu0 0
    %156 = vmatprep.subr.bf16.mxu0 0
    %157 = vmatpush1.bf16.msra.mxu0 0
    %158 = vmatprep.subr.bf16.mxu0 0
    %159 = vmatpush1.bf16.msra.mxu0 0
    %160 = vmatprep.subr.bf16.mxu0 0
    %161 = vmatpush1.bf16.msra.mxu0 0
    %162 = vmatprep.subr.bf16.mxu0 0
    %163 = vmatpush1.bf16.msra.mxu0 0
    %164 = vmatprep.subr.bf16.mxu0 0
    %165 = vmatpush1.bf16.msra.mxu0 0
    %166 = vmatprep.mubr.bf16.mxu0 0
    %167 = vmatmul.mubr.bf16.gmra.mrb[0].mxu0 %v79
    %v168 = vpop.f32.mrb[0].mxu0
    %v169 = vadd.f32 %v84, %v168
    %v170 = vpop.f32.mrb[0].mxu0
    %v171 = vpop.f32.mrb[0].mxu0
    %v172 = vpop.f32.mrb[0].mxu0
    %173 = vdwg.mxu0
    %v174 = vmax.f32 %v169, 0.0
    %v175 = vld [vmem:[#allocation7] sm:$0xf]
    %v176 = vld [vmem:[#allocation7 + $0x4] sm:$0xf]
    %v177 = vld [vmem:[#allocation7 + $0x8] sm:$0xf]
    %v178 = vld [vmem:[#allocation7 + $0xc] sm:$0xf]
    %v179 = vld [vmem:[#allocation7 + $0x10] sm:$0xf]
    %v180 = vld [vmem:[#allocation7 + $0x14] sm:$0xf]
    %v181 = vld [vmem:[#allocation7 + $0x18] sm:$0xf]
    %v182 = vld [vmem:[#allocation7 + $0x1c] sm:$0xf]
    %v183 = vld [vmem:[#allocation7 + $0x20] sm:$0xf]
    %v184 = vld [vmem:[#allocation7 + $0x24] sm:$0xf]
    %v185 = vld [vmem:[#allocation7 + $0x28] sm:$0xf]
    %v186 = vld [vmem:[#allocation7 + $0x2c] sm:$0xf]
    %v187 = vld [vmem:[#allocation7 + $0x30] sm:$0xf]
    %v188 = vld [vmem:[#allocation7 + $0x34] sm:$0xf]
    %v189 = vld [vmem:[#allocation7 + $0x38] sm:$0xf]
    %v190 = vld [vmem:[#allocation7 + $0x3c] sm:$0xf]
    %v191 = vld [vmem:[%s4] sm:$0x1]
    %v192 = vpack.c.bf16 %v174, %v174
    %v194 = vlaneseq
    %v195 = vshrl.u32 %v194, 7
    %v196 = vsub.s32 0, %v195
    %v197 = vrot.slane %v191, %v196
    %v215 = vunpack.c.l.b16 %v175
    %v216 = vunpack.c.l.b16 %v176
    %v217 = vunpack.c.l.b16 %v177
    %v218 = vunpack.c.l.b16 %v178
    %v219 = vunpack.c.l.b16 %v179
    %v220 = vunpack.c.l.b16 %v180
    %v221 = vunpack.c.l.b16 %v181
    %v222 = vunpack.c.l.b16 %v182
    %v223 = vunpack.c.l.b16 %v183
    %v224 = vunpack.c.l.b16 %v184
    %v225 = vunpack.c.l.b16 %v185
    %v226 = vunpack.c.l.b16 %v186
    %v227 = vunpack.c.l.b16 %v187
    %v228 = vunpack.c.l.b16 %v188
    %v229 = vunpack.c.l.b16 %v189
    %v230 = vunpack.c.l.b16 %v190
    %v231 = vpack.c.b16 %v216, %v215
    %v232 = vpack.c.b16 %v218, %v217
    %v233 = vpack.c.b16 %v220, %v219
    %v234 = vpack.c.b16 %v222, %v221
    %v235 = vpack.c.b16 %v224, %v223
    %v236 = vpack.c.b16 %v226, %v225
    %v237 = vpack.c.b16 %v228, %v227
    %v238 = vpack.c.b16 %v230, %v229
    %247 = vmatprep.subr.bf16.mxu0 0
    %248 = vmatpush1.bf16.msra.mxu0 %v231
    %249 = vmatprep.subr.bf16.mxu0 0
    %250 = vmatpush1.bf16.msra.mxu0 %v232
    %251 = vmatprep.subr.bf16.mxu0 0
    %252 = vmatpush1.bf16.msra.mxu0 %v233
    %253 = vmatprep.subr.bf16.mxu0 0
    %254 = vmatpush1.bf16.msra.mxu0 %v234
    %255 = vmatprep.subr.bf16.mxu0 0
    %256 = vmatpush1.bf16.msra.mxu0 %v235
    %257 = vmatprep.subr.bf16.mxu0 0
    %258 = vmatpush1.bf16.msra.mxu0 %v236
    %259 = vmatprep.subr.bf16.mxu0 0
    %260 = vmatpush1.bf16.msra.mxu0 %v237
    %261 = vmatprep.subr.bf16.mxu0 0
    %262 = vmatpush1.bf16.msra.mxu0 %v238
    %263 = vmatprep.subr.bf16.mxu0 0
    %264 = vmatpush1.bf16.msra.mxu0 0
    %265 = vmatprep.subr.bf16.mxu0 0
    %266 = vmatpush1.bf16.msra.mxu0 0
    %267 = vmatprep.subr.bf16.mxu0 0
    %268 = vmatpush1.bf16.msra.mxu0 0
    %269 = vmatprep.subr.bf16.mxu0 0
    %270 = vmatpush1.bf16.msra.mxu0 0
    %271 = vmatprep.subr.bf16.mxu0 0
    %272 = vmatpush1.bf16.msra.mxu0 0
    %273 = vmatprep.subr.bf16.mxu0 0
    %274 = vmatpush1.bf16.msra.mxu0 0
    %275 = vmatprep.subr.bf16.mxu0 0
    %276 = vmatpush1.bf16.msra.mxu0 0
    %277 = vmatprep.subr.bf16.mxu0 0
    %278 = vmatpush1.bf16.msra.mxu0 0
    %279 = vmatprep.mubr.bf16.mxu0 0
    %280 = vmatmul.mubr.bf16.gmra.mrb[0].mxu0 %v192
    %v281 = vpop.f32.mrb[0].mxu0
    %v282 = vadd.f32 %v197, %v281
    %v283 = vpop.f32.mrb[0].mxu0
    %v284 = vpop.f32.mrb[0].mxu0
    %v285 = vpop.f32.mrb[0].mxu0
    %286 = vdwg.mxu0
    %287 = vst [vmem:[#allocation8] sm:$0xff] %v282
    // Predicated region
    $region34: #{tpu_custom_call.1} parent=1 // pred_check
      _
    $region35: #{tpu_custom_call.1} parent=1 // pred_check_branch
      %289 = sbr.rel (0) target = $region37
    $region36: #{tpu_custom_call.1} parent=1 // pred_region
      %s291 = ssub.s32 128, 128
      %292 = vsyncadd [#allocation4], %s291
      %s294 = sshll.u32 [#allocation8], 4
      %s295 = int_to_ptr.vmem [resolvable:$true] %s294
      %297 = dma.vmem_to_hbm [thread:$0]  %s295, 128, %s5, [#allocation4]
    $region37: #{tpu_custom_call.1} parent=1 // pred_fallthru
      _
    // Predicated region
    $region38: #{tpu_custom_call.1} parent=1 // pred_check
      _
    $region39: #{tpu_custom_call.1} parent=1 // pred_check_branch
      %299 = sbr.rel (0) target = $region41
    $region40: #{tpu_custom_call.1} parent=1 // pred_region
      %300 = dma.done [#allocation4], 128
    $region41: #{tpu_custom_call.1} parent=1 // pred_fallthru
      _
    %301 = vsyncpa [#allocation3], 1
    %302 = vsyncpa [#allocation6], 1
    %303 = vsyncpa [#allocation4], 1

</llo_original>
